<compile_context>
chip_gen: v7x
topology: tpu7x:2x2x1
jax: 0.10.0
libtpu: 0.0.40
codegen_flags: <defaults>
</compile_context>

<pallas_src>
import functools
import math

import jax
import jax.numpy as jnp
from jax.experimental import pallas as pl
from jax.experimental.pallas import tpu as pltpu


def _soconv_same_kernel(x_ref, w_ref, b_ref, m_ref, o_ref, patch_ref, *,
                        kh, kw, ph, pw, W, P_pad):
    """One grid step = one batch image (stride-1 'same' convolution).

    x_ref:     (1, C, P_pad)       image, flattened spatial on the lane axis
    w_ref:     (O, kh*kw*C)        weights, flattened (ki, kj, c) major->minor
    b_ref:     (O, 1)              bias
    m_ref:     (kh*kw, 1, P_pad)   0/1 validity masks (in-kernel zero padding)
    o_ref:     (1, O, P_pad)       output, flattened spatial on the lane axis
    patch_ref: (kh*kw*C, P_pad)    VMEM scratch: im2col patch matrix
    """
    x = x_ref[0]                                        # (C, P_pad)
    C = x.shape[0]

    # Build the im2col patch matrix: row t*C + c holds channel c shifted by
    # tap (ki, kj).  For output pixel p the tap reads flat input index p + s;
    # the circular wrap of the roll only ever lands on masked-out positions,
    # so masking also implements the conv's zero padding.
    for ki in range(kh):
        for kj in range(kw):
            t = ki * kw + kj
            s = (ki - ph) * W + (kj - pw)
            shifted = x if s == 0 else pltpu.roll(x, (-s) % P_pad, axis=1)
            patch_ref[pl.ds(t * C, C), :] = (
                shifted * m_ref[t]).astype(patch_ref.dtype)

    # Single MXU matmul: (O, kh*kw*C) @ (kh*kw*C, P_pad) -> (O, P_pad).
    acc = jnp.dot(w_ref[...], patch_ref[...],
                  preferred_element_type=jnp.float32)
    acc = acc + b_ref[...]                              # (O, 1) broadcast once
    o_ref[0] = acc.astype(o_ref.dtype)


def soconv_forward(x_nchw, weight_oihw, bias, *, stride, padding):
    """Forward pass of SOCONV (== self.conv1(x)). NCHW in, NCHW out."""
    st = int(stride)
    p = int(padding)
    O, C, kh, kw = weight_oihw.shape
    N, Cx, H, W = x_nchw.shape
    assert Cx == C

    # Fast path: SOCONV's stride-1 'same' configuration (odd kernel,
    # padding == (k-1)//2), for which the conv reduces to lane rolls + masks
    # + one matmul per image.
    # TODO(synk): general stride/padding path (row-tiled strided im2col over a
    # pre-padded image) is not implemented.
    assert (st == 1 and kh % 2 == 1 and kw % 2 == 1
            and 2 * p == kh - 1 and 2 * p == kw - 1), (
        "Pallas SOCONV kernel currently supports stride=1 'same' convs only")

    oh, ow = H, W
    P = H * W
    P_pad = -(-P // 128) * 128          # lane-dense spatial axis
    ph, pw = p, p

    x_flat = x_nchw.reshape(N, C, P)    # free reshape; channels-first kept
    if P_pad != P:
        x_flat = jnp.pad(x_flat, ((0, 0), (0, 0), (0, P_pad - P)))

    # Weights flattened tap-major / channel-minor to match the patch rows.
    w2 = jnp.transpose(weight_oihw, (0, 2, 3, 1)).reshape(O, kh * kw * C)
    b2 = bias.reshape(O, 1)

    # 0/1 masks implementing the conv's zero padding (per-tap validity of each
    # output position); tiny constant, folded at trace time.
    pidx = jnp.arange(P_pad, dtype=jnp.int32)
    oi, oj = pidx // W, pidx % W
    rows = []
    for ki in range(kh):
        for kj in range(kw):
            ii, jj = oi + (ki - ph), oj + (kj - pw)
            rows.append((ii >= 0) & (ii < H) & (jj >= 0) & (jj < W)
                        & (pidx < P))
    mask = jnp.stack(rows, 0).astype(x_nchw.dtype).reshape(kh * kw, 1, P_pad)

    kernel = functools.partial(_soconv_same_kernel, kh=kh, kw=kw, ph=ph,
                               pw=pw, W=W, P_pad=P_pad)

    # TODO(synk): for large images add a row-tile grid axis (with a kh-1 halo)
    # so per-step VMEM stays bounded (64 MiB on v7x) and the pipeline has more
    # than N steps; at 16x16x4 a whole image per step is only ~4 KiB, so one
    # image per step is the right tile here.
    out_flat = pl.pallas_call(
        kernel,
        out_shape=jax.ShapeDtypeStruct((N, O, P_pad), x_nchw.dtype),
        grid_spec=pltpu.PrefetchScalarGridSpec(
            num_scalar_prefetch=0,
            grid=(N,),
            in_specs=[
                pl.BlockSpec((1, C, P_pad), lambda n: (n, 0, 0)),
                pl.BlockSpec((O, kh * kw * C), lambda n: (0, 0)),
                pl.BlockSpec((O, 1), lambda n: (0, 0)),
                pl.BlockSpec((kh * kw, 1, P_pad), lambda n: (0, 0, 0)),
            ],
            out_specs=pl.BlockSpec((1, O, P_pad), lambda n: (n, 0, 0)),
            scratch_shapes=[pltpu.VMEM((kh * kw * C, P_pad), jnp.float32)],
        ),
        compiler_params=pltpu.CompilerParams(
            dimension_semantics=("parallel",)),
    )(x_flat, w2, b2, mask)

    if P_pad != P:
        out_flat = out_flat[:, :, :P]
    return out_flat.reshape(N, O, oh, ow)   # already NCHW; no transpose


if __name__ == "__main__":
    # Module config (mirrors SOCONV.__init__): num_kernels is a perfect square
    # for the SOM location grid, though forward() only uses conv1.
    in_channels = 4
    num_kernels = 16
    kernel_size = 3
    stride = 1
    padding = 1

    N, H, W = 2, 16, 16

    key = jax.random.PRNGKey(0)
    kx, kw_, kb = jax.random.split(key, 3)

    # Deterministic parameter init (same shapes as nn.Conv2d in __init__).
    fan_in = in_channels * kernel_size * kernel_size
    bound = 1.0 / math.sqrt(fan_in)
    weight = jax.random.uniform(
        kw_, (num_kernels, in_channels, kernel_size, kernel_size),
        minval=-bound, maxval=bound, dtype=jnp.float32)
    bias = jax.random.uniform(
        kb, (num_kernels,), minval=-bound, maxval=bound, dtype=jnp.float32)
    x = jax.random.normal(kx, (N, in_channels, H, W), dtype=jnp.float32)

    fwd = jax.jit(functools.partial(soconv_forward, stride=stride,
                                    padding=padding))
    out = jax.block_until_ready(fwd(x, weight, bias))

    # Sanity-check against XLA's conv (not part of the kernel path).
    ref = jax.lax.conv_general_dilated(
        x, weight, window_strides=(stride, stride),
        padding=((padding, padding), (padding, padding)),
        dimension_numbers=("NCHW", "OIHW", "NCHW")) + bias[None, :, None, None]
    assert out.shape == (N, num_kernels, H, W)
    assert jnp.max(jnp.abs(out - ref)) < 1e-4

    print("KERNEL_OK")
</pallas_src>

<mosaic_0001>
module attributes {stable_mosaic.version = 11 : i64} {
  func.func @_soconv_same_kernel(%arg0: i32, %arg1: memref<1x4x256xf32, #tpu.memory_space<vmem>>, %arg2: memref<16x36xf32, #tpu.memory_space<vmem>>, %arg3: memref<16x1xf32, #tpu.memory_space<vmem>>, %arg4: memref<9x1x256xf32, #tpu.memory_space<vmem>>, %arg5: memref<1x16x256xf32, #tpu.memory_space<vmem>>, %arg6: memref<36x256xf32, #tpu.memory_space<vmem>>) attributes {dimension_semantics = [#tpu.dimension_semantics<parallel>], iteration_bounds = array<i64: 2>, scalar_prefetch = 0 : i64, scratch_operands = 1 : i64, tpu.core_type = #tpu.core_type<tc>, window_params = [{transform_indices = @transform_0, window_bounds = array<i64: 1, 4, 256>}, {pipeline_mode = #tpu.pipeline_mode<synchronous>, transform_indices = @transform_1, window_bounds = array<i64: 16, 36>}, {pipeline_mode = #tpu.pipeline_mode<synchronous>, transform_indices = @transform_2, window_bounds = array<i64: 16, 1>}, {pipeline_mode = #tpu.pipeline_mode<synchronous>, transform_indices = @transform_3, window_bounds = array<i64: 9, 1, 256>}, {transform_indices = @transform_4, window_bounds = array<i64: 1, 16, 256>}]} {
    %c0 = arith.constant 0 : index
    %c0_0 = arith.constant 0 : index
    %c0_1 = arith.constant 0 : index
    %0 = vector.load %arg1[%c0, %c0_0, %c0_1] : memref<1x4x256xf32, #tpu.memory_space<vmem>>, vector<1x4x256xf32>
    %1 = vector.shape_cast %0 : vector<1x4x256xf32> to vector<4x256xf32>
    %c17_i32 = arith.constant 17 : i32
    %2 = tpu.dynamic_rotate %1 by %c17_i32 dim 1 : vector<4x256xf32>, i32 -> vector<4x256xf32>
    %c0_2 = arith.constant 0 : index
    %c0_3 = arith.constant 0 : index
    %c0_4 = arith.constant 0 : index
    %3 = vector.load %arg4[%c0_2, %c0_3, %c0_4] : memref<9x1x256xf32, #tpu.memory_space<vmem>>, vector<1x1x256xf32>
    %4 = vector.shape_cast %3 : vector<1x1x256xf32> to vector<1x256xf32>
    %5 = vector.broadcast %4 : vector<1x256xf32> to vector<4x256xf32>
    %6 = arith.mulf %2, %5 : vector<4x256xf32>
    %c0_5 = arith.constant 0 : index
    %c0_6 = arith.constant 0 : index
    %7 = vector.load %arg6[%c0_5, %c0_6] : memref<36x256xf32, #tpu.memory_space<vmem>>, vector<4x256xf32>
    tpu.vector_store %arg6[%c0_5, %c0_6], %6 {strides = array<i32>} : memref<36x256xf32, #tpu.memory_space<vmem>>, vector<4x256xf32>,
    %c16_i32 = arith.constant 16 : i32
    %8 = tpu.dynamic_rotate %1 by %c16_i32 dim 1 : vector<4x256xf32>, i32 -> vector<4x256xf32>
    %c1 = arith.constant 1 : index
    %c0_7 = arith.constant 0 : index
    %c0_8 = arith.constant 0 : index
    %9 = vector.load %arg4[%c1, %c0_7, %c0_8] : memref<9x1x256xf32, #tpu.memory_space<vmem>>, vector<1x1x256xf32>
    %10 = vector.shape_cast %9 : vector<1x1x256xf32> to vector<1x256xf32>
    %11 = vector.broadcast %10 : vector<1x256xf32> to vector<4x256xf32>
    %12 = arith.mulf %8, %11 : vector<4x256xf32>
    %c4 = arith.constant 4 : index
    %c0_9 = arith.constant 0 : index
    %13 = vector.load %arg6[%c4, %c0_9] : memref<36x256xf32, #tpu.memory_space<vmem>>, vector<4x256xf32>
    tpu.vector_store %arg6[%c4, %c0_9], %12 {strides = array<i32>} : memref<36x256xf32, #tpu.memory_space<vmem>>, vector<4x256xf32>,
    %c15_i32 = arith.constant 15 : i32
    %14 = tpu.dynamic_rotate %1 by %c15_i32 dim 1 : vector<4x256xf32>, i32 -> vector<4x256xf32>
    %c2 = arith.constant 2 : index
    %c0_10 = arith.constant 0 : index
    %c0_11 = arith.constant 0 : index
    %15 = vector.load %arg4[%c2, %c0_10, %c0_11] : memref<9x1x256xf32, #tpu.memory_space<vmem>>, vector<1x1x256xf32>
    %16 = vector.shape_cast %15 : vector<1x1x256xf32> to vector<1x256xf32>
    %17 = vector.broadcast %16 : vector<1x256xf32> to vector<4x256xf32>
    %18 = arith.mulf %14, %17 : vector<4x256xf32>
    %c8 = arith.constant 8 : index
    %c0_12 = arith.constant 0 : index
    %19 = vector.load %arg6[%c8, %c0_12] : memref<36x256xf32, #tpu.memory_space<vmem>>, vector<4x256xf32>
    tpu.vector_store %arg6[%c8, %c0_12], %18 {strides = array<i32>} : memref<36x256xf32, #tpu.memory_space<vmem>>, vector<4x256xf32>,
    %c1_i32 = arith.constant 1 : i32
    %20 = tpu.dynamic_rotate %1 by %c1_i32 dim 1 : vector<4x256xf32>, i32 -> vector<4x256xf32>
    %c3 = arith.constant 3 : index
    %c0_13 = arith.constant 0 : index
    %c0_14 = arith.constant 0 : index
    %21 = vector.load %arg4[%c3, %c0_13, %c0_14] : memref<9x1x256xf32, #tpu.memory_space<vmem>>, vector<1x1x256xf32>
    %22 = vector.shape_cast %21 : vector<1x1x256xf32> to vector<1x256xf32>
    %23 = vector.broadcast %22 : vector<1x256xf32> to vector<4x256xf32>
    %24 = arith.mulf %20, %23 : vector<4x256xf32>
    %c12 = arith.constant 12 : index
    %c0_15 = arith.constant 0 : index
    %25 = vector.load %arg6[%c12, %c0_15] : memref<36x256xf32, #tpu.memory_space<vmem>>, vector<4x256xf32>
    tpu.vector_store %arg6[%c12, %c0_15], %24 {strides = array<i32>} : memref<36x256xf32, #tpu.memory_space<vmem>>, vector<4x256xf32>,
    %c4_16 = arith.constant 4 : index
    %c0_17 = arith.constant 0 : index
    %c0_18 = arith.constant 0 : index
    %26 = vector.load %arg4[%c4_16, %c0_17, %c0_18] : memref<9x1x256xf32, #tpu.memory_space<vmem>>, vector<1x1x256xf32>
    %27 = vector.shape_cast %26 : vector<1x1x256xf32> to vector<1x256xf32>
    %28 = vector.broadcast %27 : vector<1x256xf32> to vector<4x256xf32>
    %29 = arith.mulf %1, %28 : vector<4x256xf32>
    %c16 = arith.constant 16 : index
    %c0_19 = arith.constant 0 : index
    %30 = vector.load %arg6[%c16, %c0_19] : memref<36x256xf32, #tpu.memory_space<vmem>>, vector<4x256xf32>
    tpu.vector_store %arg6[%c16, %c0_19], %29 {strides = array<i32>} : memref<36x256xf32, #tpu.memory_space<vmem>>, vector<4x256xf32>,
    %c255_i32 = arith.constant 255 : i32
    %31 = tpu.dynamic_rotate %1 by %c255_i32 dim 1 : vector<4x256xf32>, i32 -> vector<4x256xf32>
    %c5 = arith.constant 5 : index
    %c0_20 = arith.constant 0 : index
    %c0_21 = arith.constant 0 : index
    %32 = vector.load %arg4[%c5, %c0_20, %c0_21] : memref<9x1x256xf32, #tpu.memory_space<vmem>>, vector<1x1x256xf32>
    %33 = vector.shape_cast %32 : vector<1x1x256xf32> to vector<1x256xf32>
    %34 = vector.broadcast %33 : vector<1x256xf32> to vector<4x256xf32>
    %35 = arith.mulf %31, %34 : vector<4x256xf32>
    %c20 = arith.constant 20 : index
    %c0_22 = arith.constant 0 : index
    %36 = vector.load %arg6[%c20, %c0_22] : memref<36x256xf32, #tpu.memory_space<vmem>>, vector<4x256xf32>
    tpu.vector_store %arg6[%c20, %c0_22], %35 {strides = array<i32>} : memref<36x256xf32, #tpu.memory_space<vmem>>, vector<4x256xf32>,
    %c241_i32 = arith.constant 241 : i32
    %37 = tpu.dynamic_rotate %1 by %c241_i32 dim 1 : vector<4x256xf32>, i32 -> vector<4x256xf32>
    %c6 = arith.constant 6 : index
    %c0_23 = arith.constant 0 : index
    %c0_24 = arith.constant 0 : index
    %38 = vector.load %arg4[%c6, %c0_23, %c0_24] : memref<9x1x256xf32, #tpu.memory_space<vmem>>, vector<1x1x256xf32>
    %39 = vector.shape_cast %38 : vector<1x1x256xf32> to vector<1x256xf32>
    %40 = vector.broadcast %39 : vector<1x256xf32> to vector<4x256xf32>
    %41 = arith.mulf %37, %40 : vector<4x256xf32>
    %c24 = arith.constant 24 : index
    %c0_25 = arith.constant 0 : index
    %42 = vector.load %arg6[%c24, %c0_25] : memref<36x256xf32, #tpu.memory_space<vmem>>, vector<4x256xf32>
    tpu.vector_store %arg6[%c24, %c0_25], %41 {strides = array<i32>} : memref<36x256xf32, #tpu.memory_space<vmem>>, vector<4x256xf32>,
    %c240_i32 = arith.constant 240 : i32
    %43 = tpu.dynamic_rotate %1 by %c240_i32 dim 1 : vector<4x256xf32>, i32 -> vector<4x256xf32>
    %c7 = arith.constant 7 : index
    %c0_26 = arith.constant 0 : index
    %c0_27 = arith.constant 0 : index
    %44 = vector.load %arg4[%c7, %c0_26, %c0_27] : memref<9x1x256xf32, #tpu.memory_space<vmem>>, vector<1x1x256xf32>
    %45 = vector.shape_cast %44 : vector<1x1x256xf32> to vector<1x256xf32>
    %46 = vector.broadcast %45 : vector<1x256xf32> to vector<4x256xf32>
    %47 = arith.mulf %43, %46 : vector<4x256xf32>
    %c28 = arith.constant 28 : index
    %c0_28 = arith.constant 0 : index
    %48 = vector.load %arg6[%c28, %c0_28] : memref<36x256xf32, #tpu.memory_space<vmem>>, vector<4x256xf32>
    tpu.vector_store %arg6[%c28, %c0_28], %47 {strides = array<i32>} : memref<36x256xf32, #tpu.memory_space<vmem>>, vector<4x256xf32>,
    %c239_i32 = arith.constant 239 : i32
    %49 = tpu.dynamic_rotate %1 by %c239_i32 dim 1 : vector<4x256xf32>, i32 -> vector<4x256xf32>
    %c8_29 = arith.constant 8 : index
    %c0_30 = arith.constant 0 : index
    %c0_31 = arith.constant 0 : index
    %50 = vector.load %arg4[%c8_29, %c0_30, %c0_31] : memref<9x1x256xf32, #tpu.memory_space<vmem>>, vector<1x1x256xf32>
    %51 = vector.shape_cast %50 : vector<1x1x256xf32> to vector<1x256xf32>
    %52 = vector.broadcast %51 : vector<1x256xf32> to vector<4x256xf32>
    %53 = arith.mulf %49, %52 : vector<4x256xf32>
    %c32 = arith.constant 32 : index
    %c0_32 = arith.constant 0 : index
    %54 = vector.load %arg6[%c32, %c0_32] : memref<36x256xf32, #tpu.memory_space<vmem>>, vector<4x256xf32>
    tpu.vector_store %arg6[%c32, %c0_32], %53 {strides = array<i32>} : memref<36x256xf32, #tpu.memory_space<vmem>>, vector<4x256xf32>,
    %c0_33 = arith.constant 0 : index
    %c0_34 = arith.constant 0 : index
    %55 = vector.load %arg2[%c0_33, %c0_34] : memref<16x36xf32, #tpu.memory_space<vmem>>, vector<16x36xf32>
    %c0_35 = arith.constant 0 : index
    %c0_36 = arith.constant 0 : index
    %56 = vector.load %arg6[%c0_35, %c0_36] : memref<36x256xf32, #tpu.memory_space<vmem>>, vector<36x256xf32>
    %cst = arith.constant dense<0.000000e+00> : vector<16x256xf32>
    %57 = tpu.matmul %55, %56, %cst {dimension_numbers = #tpu.dot_dimension_numbers<[1], [0], [0], [1], [0, 0, 1, 1], [], []>} : vector<16x36xf32>, vector<36x256xf32>, vector<16x256xf32> -> vector<16x256xf32>
    %c0_37 = arith.constant 0 : index
    %c0_38 = arith.constant 0 : index
    %58 = vector.load %arg3[%c0_37, %c0_38] : memref<16x1xf32, #tpu.memory_space<vmem>>, vector<16x1xf32>
    %59 = vector.broadcast %58 : vector<16x1xf32> to vector<16x256xf32>
    %60 = arith.addf %57, %59 : vector<16x256xf32>
    %c0_39 = arith.constant 0 : index
    %c0_40 = arith.constant 0 : index
    %c0_41 = arith.constant 0 : index
    %61 = vector.load %arg5[%c0_39, %c0_40, %c0_41] : memref<1x16x256xf32, #tpu.memory_space<vmem>>, vector<1x16x256xf32>
    %62 = vector.shape_cast %61 : vector<1x16x256xf32> to vector<16x256xf32>
    %63 = vector.shape_cast %60 : vector<16x256xf32> to vector<1x16x256xf32>
    tpu.vector_store %arg5[%c0_39, %c0_40, %c0_41], %63 {strides = array<i32>} : memref<1x16x256xf32, #tpu.memory_space<vmem>>, vector<1x16x256xf32>,
    return
  }
  func.func @transform_0(%arg0: i32) -> (i32, i32, i32) {
    %c0_i32 = arith.constant 0 : i32
    %c0_i32_0 = arith.constant 0 : i32
    %c0_i32_1 = arith.constant 0 : i32
    return %arg0, %c0_i32, %c0_i32_0 : i32, i32, i32
  }
  func.func @transform_1(%arg0: i32) -> (i32, i32) {
    %c0_i32 = arith.constant 0 : i32
    %c0_i32_0 = arith.constant 0 : i32
    %c0_i32_1 = arith.constant 0 : i32
    return %c0_i32, %c0_i32_0 : i32, i32
  }
  func.func @transform_2(%arg0: i32) -> (i32, i32) {
    %c0_i32 = arith.constant 0 : i32
    %c0_i32_0 = arith.constant 0 : i32
    %c0_i32_1 = arith.constant 0 : i32
    return %c0_i32, %c0_i32_0 : i32, i32
  }
  func.func @transform_3(%arg0: i32) -> (i32, i32, i32) {
    %c0_i32 = arith.constant 0 : i32
    %c0_i32_0 = arith.constant 0 : i32
    %c0_i32_1 = arith.constant 0 : i32
    %c0_i32_2 = arith.constant 0 : i32
    return %c0_i32, %c0_i32_0, %c0_i32_1 : i32, i32, i32
  }
  func.func @transform_4(%arg0: i32) -> (i32, i32, i32) {
    %c0_i32 = arith.constant 0 : i32
    %c0_i32_0 = arith.constant 0 : i32
    %c0_i32_1 = arith.constant 0 : i32
    return %arg0, %c0_i32, %c0_i32_0 : i32, i32, i32
  }
}

</mosaic_0001>

<llo_original>
// kernel: soconv_forward.1
$region0: #{soconv_forward.1}
  #allocation0 [shape = 'u32[]', space=smem, size = 0x4, offset = 0x4, fixed_abs, tag = 'smem constant byte address 0x4 - core index']
  #allocation1 [shape = 'u32[144,128]{1,0:T(1,128)}', space=vmem, size = 0x12000, scoped, tag = 'internal scratch']
  #allocation2 [shape = 'f32[36,256]{1,0:T(8,128)}', space=vmem, size = 0xa000, scoped, tag = 'scratch operand']
  %s0 = inlined_call_operand.vmem [shape: f32[2,4,256], index: 0, kind: input, shape index: {}]
  %s1 = inlined_call_operand.vmem [shape: f32[16,36], index: 1, kind: input, shape index: {}]
  %s2 = inlined_call_operand.vmem [shape: f32[16,1], index: 2, kind: input, shape index: {}]
  %s3 = inlined_call_operand.vmem [shape: f32[9,1,256], index: 3, kind: input, shape index: {}]
  %s4 = inlined_call_operand.vmem [shape: f32[2,16,256], index: 4, kind: output, shape index: {}]
  %s5 = sld [smem:[#allocation0]]
  $region49: #{soconv_forward.1} parent=0
    _
  %s7 = ssub.s32 1, %s5
  %s8 = scalar_select 0, %s7, %s5
  loop: start=0, step=1, limit=4
  $region2: #{soconv_forward.1} parent=0 // loop_pre_header
    _
  $region3: #{soconv_forward.1} parent=0 // loop_header
    %s10 = sphi 0, %s14
    %p11 = scmp.ge.s32.totalorder %s10, 4
    %s20 = sphi 0, %s22
    %s23 = sphi 0, %s20
    %s24 = sphi 0, %s23
    %s40 = sphi 0, %s24
    %s44 = sphi 0, %s44
    %s46 = sphi 0, %s44
    %s47 = sphi 0, %s46
    %s61 = sphi 0, %s47
    %s65 = sphi 0, %s65
    %s67 = sphi 0, %s65
    %s68 = sphi 0, %s67
    %s82 = sphi 0, %s68
    %s86 = sphi 0, %s86
    %s88 = sphi 0, %s86
    %s89 = sphi 0, %s88
    %s103 = sphi 0, %s89
    %s109 = sphi 0, %s111
    %s112 = sphi 0, %s109
    %s113 = sphi 0, %s112
    %s129 = sphi 0, %s113
  $region4: #{soconv_forward.1} parent=0 // loop_header_branch
    %13 = sbr.rel (%p11) target = $region8
  $region5: #{soconv_forward.1} parent=0 // loop_body
    %s15 = ssub.s32 %s10, 1
    %s16 = ssub.s32 %s10, 2
    %s17 = sadd.s32 %s10, 1
    %s18 = ssub.s32 %s10, %s17
    %p19 = scmp.eq.s32.totalorder %s18, 0
    %s21 = sadd.s32 %s20, 1
    %s22 = scalar_select %p19, %s20, %s21
    %p25 = pneg %p19
    %p26 = scmp.eq.s32.totalorder %s10, 1
    %p27 = por %p25, %p26
    %p28 = scmp.ne.s32.totalorder %s20, %s23
    %p29 = scmp.eq.s32.totalorder %s10, 0
    %p30 = por %p28, %p29
    %p31 = scmp.ne.s32.totalorder %s20, %s23
    %p32 = scmp.eq.s32.totalorder %s15, 1
    %p33 = por %p31, %p32
    %p34 = scmp.ne.s32.totalorder %s23, %s24
    %p35 = scmp.eq.s32.totalorder %s15, 0
    %p36 = por %p34, %p35
    %p37 = scmp.ne.s32.totalorder %s23, %s24
    %p38 = scmp.eq.s32.totalorder %s16, 1
    %p39 = por %p37, %p38
    %p41 = scmp.ne.s32.totalorder %s24, %s40
    %p42 = scmp.eq.s32.totalorder %s16, 0
    %p43 = por %p41, %p42
    %s45 = sadd.s32 %s44, 1
    %p48 = scmp.eq.s32.totalorder %s10, 1
    %p49 = scmp.ne.s32.totalorder %s44, %s46
    %p50 = scmp.eq.s32.totalorder %s10, 0
    %p51 = por %p49, %p50
    %p52 = scmp.ne.s32.totalorder %s44, %s46
    %p53 = scmp.eq.s32.totalorder %s15, 1
    %p54 = por %p52, %p53
    %p55 = scmp.ne.s32.totalorder %s46, %s47
    %p56 = scmp.eq.s32.totalorder %s15, 0
    %p57 = por %p55, %p56
    %p58 = scmp.ne.s32.totalorder %s46, %s47
    %p59 = scmp.eq.s32.totalorder %s16, 1
    %p60 = por %p58, %p59
    %p62 = scmp.ne.s32.totalorder %s47, %s61
    %p63 = scmp.eq.s32.totalorder %s16, 0
    %p64 = por %p62, %p63
    %s66 = sadd.s32 %s65, 1
    %p69 = scmp.eq.s32.totalorder %s10, 1
    %p70 = scmp.ne.s32.totalorder %s65, %s67
    %p71 = scmp.eq.s32.totalorder %s10, 0
    %p72 = por %p70, %p71
    %p73 = scmp.ne.s32.totalorder %s65, %s67
    %p74 = scmp.eq.s32.totalorder %s15, 1
    %p75 = por %p73, %p74
    %p76 = scmp.ne.s32.totalorder %s67, %s68
    %p77 = scmp.eq.s32.totalorder %s15, 0
    %p78 = por %p76, %p77
    %p79 = scmp.ne.s32.totalorder %s67, %s68
    %p80 = scmp.eq.s32.totalorder %s16, 1
    %p81 = por %p79, %p80
    %p83 = scmp.ne.s32.totalorder %s68, %s82
    %p84 = scmp.eq.s32.totalorder %s16, 0
    %p85 = por %p83, %p84
    %s87 = sadd.s32 %s86, 1
    %p90 = scmp.eq.s32.totalorder %s10, 1
    %p91 = scmp.ne.s32.totalorder %s86, %s88
    %p92 = scmp.eq.s32.totalorder %s10, 0
    %p93 = por %p91, %p92
    %p94 = scmp.ne.s32.totalorder %s86, %s88
    %p95 = scmp.eq.s32.totalorder %s15, 1
    %p96 = por %p94, %p95
    %p97 = scmp.ne.s32.totalorder %s88, %s89
    %p98 = scmp.eq.s32.totalorder %s15, 0
    %p99 = por %p97, %p98
    %p100 = scmp.ne.s32.totalorder %s88, %s89
    %p101 = scmp.eq.s32.totalorder %s16, 1
    %p102 = por %p100, %p101
    %p104 = scmp.ne.s32.totalorder %s89, %s103
    %p105 = scmp.eq.s32.totalorder %s16, 0
    %p106 = por %p104, %p105
    %s107 = ssub.s32 %s10, %s17
    %p108 = scmp.eq.s32.totalorder %s107, 0
    %s110 = sadd.s32 %s109, 1
    %s111 = scalar_select %p108, %s109, %s110
    %p114 = pneg %p108
    %p115 = scmp.eq.s32.totalorder %s10, 1
    %p116 = por %p114, %p115
    %p117 = scmp.ne.s32.totalorder %s109, %s112
    %p118 = scmp.eq.s32.totalorder %s10, 0
    %p119 = por %p117, %p118
    %p120 = scmp.ne.s32.totalorder %s109, %s112
    %p121 = scmp.eq.s32.totalorder %s15, 1
    %p122 = por %p120, %p121
    %p123 = scmp.ne.s32.totalorder %s112, %s113
    %p124 = scmp.eq.s32.totalorder %s15, 0
    %p125 = por %p123, %p124
    %p126 = scmp.ne.s32.totalorder %s112, %s113
    %p127 = scmp.eq.s32.totalorder %s16, 1
    %p128 = por %p126, %p127
    %p130 = scmp.ne.s32.totalorder %s113, %s129
    %p131 = scmp.eq.s32.totalorder %s16, 0
    %p132 = por %p130, %p131
    %p133 = scmp.le.s32.totalorder 1, %s10
    %p134 = scmp.lt.s32.totalorder %s10, 3
    %p135 = pnand %p133, %p134
    %p136 = pneg %p135
    // Predicated region
    $region9: #{soconv_forward.1} parent=5 // pred_check
      _
    $region10: #{soconv_forward.1} parent=5 // pred_check_branch
      %138 = sbr.rel (%p135) target = $region12
    $region11: #{soconv_forward.1} parent=5 // pred_region
      %s139 = ssub.s32 %s10, 1
      // Predicated region
      $region13: #{soconv_forward.1} parent=11 // pred_check
        %p140 = pneg %p57
      $region14: #{soconv_forward.1} parent=11 // pred_check_branch
        %142 = sbr.rel (%p140) target = $region16
      $region15: #{soconv_forward.1} parent=11 // pred_region
        _
      $region16: #{soconv_forward.1} parent=11 // pred_fallthru
        _
      // Predicated region
      $region17: #{soconv_forward.1} parent=11 // pred_check
        %p143 = pneg %p78
      $region18: #{soconv_forward.1} parent=11 // pred_check_branch
        %145 = sbr.rel (%p143) target = $region20
      $region19: #{soconv_forward.1} parent=11 // pred_region
        _
      $region20: #{soconv_forward.1} parent=11 // pred_fallthru
        _
      // Predicated region
      $region21: #{soconv_forward.1} parent=11 // pred_check
        %p146 = pneg %p99
      $region22: #{soconv_forward.1} parent=11 // pred_check_branch
        %148 = sbr.rel (%p146) target = $region24
      $region23: #{soconv_forward.1} parent=11 // pred_region
        _
      $region24: #{soconv_forward.1} parent=11 // pred_fallthru
        _
    $region12: #{soconv_forward.1} parent=5 // pred_fallthru
      _
    %p149 = scmp.lt.s32.totalorder %s10, 2
    // Predicated region
    $region25: #{soconv_forward.1} parent=5 // pred_check
      %p150 = pneg %p149
    $region26: #{soconv_forward.1} parent=5 // pred_check_branch
      %152 = sbr.rel (%p150) target = $region28
    $region27: #{soconv_forward.1} parent=5 // pred_region
      // Predicated region
      $region29: #{soconv_forward.1} parent=27 // pred_check
        %p153 = pneg %p30
      $region30: #{soconv_forward.1} parent=27 // pred_check_branch
        %155 = sbr.rel (%p153) target = $region32
      $region31: #{soconv_forward.1} parent=27 // pred_region
        %p156 = scmp.lt.s32.totalorder %s10, 1
        %s157 = scalar_select %p156, %s10, 1
        %s158 = smul.addr %s157, 2
        %s159 = smul.addr %s158, 4
        %s160 = scalar_lea.vmem %s0, %s159
      $region32: #{soconv_forward.1} parent=27 // pred_fallthru
        _
    $region28: #{soconv_forward.1} parent=5 // pred_fallthru
      _
    %p161 = scmp.le.s32.totalorder 1, %s10
    %p162 = scmp.lt.s32.totalorder %s10, 3
    %p163 = pnand %p161, %p162
    %p164 = pneg %p163
    // Predicated region
    $region33: #{soconv_forward.1} parent=5 // pred_check
      _
    $region34: #{soconv_forward.1} parent=5 // pred_check_branch
      %166 = sbr.rel (%p163) target = $region36
    $region35: #{soconv_forward.1} parent=5 // pred_region
      %s167 = ssub.s32 %s10, 1
      %p168 = scmp.lt.s32.totalorder %s15, 1
      %s169 = scalar_select %p168, %s15, 1
      %s170 = smul.addr %s169, 2
      %s171 = smul.addr %s170, 4
      %s172 = scalar_lea.vmem %s0, %s171
      %p173 = pneg %p36
      %p174 = pneg %p33
      %p175 = pneg %p57
      %p176 = pneg %p54
      %p177 = pneg %p78
      %p178 = pneg %p75
      %p179 = pneg %p99
      %p180 = pneg %p96
      %p181 = pneg %p125
      %p182 = pneg %p122
      %p183 = scmp.lt.s32.totalorder %s15, 1
      %s184 = scalar_select %p183, %s15, 1
      %s185 = smul.addr %s184, 4
      %s186 = smul.addr %s185, 8
      %s187 = scalar_lea.vmem %s4, %s186
      %p188 = scmp.lt.s32.totalorder %s15, 1
      %s189 = scalar_select %p188, %s15, 1
      %s190 = smul.addr %s189, 2
      %s191 = smul.addr %s190, 4
      %s192 = scalar_lea.vmem %s0, %s191
      %p193 = scmp.lt.s32.totalorder %s15, 1
      %s194 = scalar_select %p193, %s15, 1
      %s195 = smul.addr %s194, 4
      %s196 = smul.addr %s195, 8
      %s197 = scalar_lea.vmem %s4, %s196
      %v198 = vld [vmem:[%s192] sm:$0xff]
      %v200 = vcombine.high %v198, %v198
      %202 = vrot.lane.b32.xlu0 %v198, 17
      %v203 = vpop.permute.xlu0 %202
      %204 = vrot.lane.b32.xlu0 %v200, 17
      %v205 = vpop.permute.xlu0 %204
      %v206 = vlaneseq
      %v207 = vand.u32 %v206, 127
      %vm208 = vcmp.lt.s32.totalorder %v207, 17
      %v209 = vsel %vm208, %v203, %v205
      %v210 = vsel %vm208, %v205, %v203
      %v211 = vld [vmem:[%s3] sm:$0x3]
      %v213 = vlaneseq
      %v214 = vshrl.u32 %v213, 7
      %v215 = vsub.s32 0, %v214
      %v216 = vrot.slane %v211, %v215
      %v217 = vlaneseq
      %v218 = vshrl.u32 %v217, 7
      %v219 = vsub.s32 1, %v218
      %v220 = vrot.slane %v211, %v219
      %v223 = vmul.f32 %v210, %v216
      %v224 = vmul.f32 %v209, %v220
      %225 = vst [vmem:[#allocation2] sm:$0xf] %v223
      %226 = vst [vmem:[#allocation2 + $0x8] sm:$0xf] %v224
      %227 = vrot.lane.b32.xlu0 %v198, 16
      %v228 = vpop.permute.xlu0 %227
      %229 = vrot.lane.b32.xlu0 %v200, 16
      %v230 = vpop.permute.xlu0 %229
      %vm231 = vcmp.lt.s32.totalorder %v207, 16
      %v232 = vsel %vm231, %v228, %v230
      %v233 = vsel %vm231, %v230, %v228
      %s234 = scalar_lea.vmem %s3, 2
      %v235 = vld [vmem:[%s234] sm:$0x3]
      %v237 = vlaneseq
      %v238 = vshrl.u32 %v237, 7
      %v239 = vsub.s32 0, %v238
      %v240 = vrot.slane %v235, %v239
      %v241 = vlaneseq
      %v242 = vshrl.u32 %v241, 7
      %v243 = vsub.s32 1, %v242
      %v244 = vrot.slane %v235, %v243
      %v247 = vmul.f32 %v233, %v240
      %v248 = vmul.f32 %v232, %v244
      %v251 = vrot.slane %v247, 4
      %v252 = vrot.slane %v248, 4
      %255 = vst [vmem:[#allocation2] sm:$0xf0] %v251
      %256 = vst [vmem:[#allocation2 + $0x8] sm:$0xf0] %v252
      %257 = vrot.lane.b32.xlu0 %v198, 15
      %v258 = vpop.permute.xlu0 %257
      %259 = vrot.lane.b32.xlu0 %v200, 15
      %v260 = vpop.permute.xlu0 %259
      %vm261 = vcmp.lt.s32.totalorder %v207, 15
      %v262 = vsel %vm261, %v258, %v260
      %v263 = vsel %vm261, %v260, %v258
      %s264 = scalar_lea.vmem %s3, 4
      %v265 = vld [vmem:[%s264] sm:$0x3]
      %v267 = vlaneseq
      %v268 = vshrl.u32 %v267, 7
      %v269 = vsub.s32 0, %v268
      %v270 = vrot.slane %v265, %v269
      %v271 = vlaneseq
      %v272 = vshrl.u32 %v271, 7
      %v273 = vsub.s32 1, %v272
      %v274 = vrot.slane %v265, %v273
      %v277 = vmul.f32 %v263, %v270
      %v278 = vmul.f32 %v262, %v274
      %279 = vst [vmem:[#allocation2 + $0x10] sm:$0xf] %v277
      %280 = vst [vmem:[#allocation2 + $0x18] sm:$0xf] %v278
      %281 = vrot.lane.b32.xlu0 %v198, 1
      %v282 = vpop.permute.xlu0 %281
      %283 = vrot.lane.b32.xlu0 %v200, 1
      %v284 = vpop.permute.xlu0 %283
      %vm285 = vcmp.lt.s32.totalorder %v207, 1
      %v286 = vsel %vm285, %v282, %v284
      %v287 = vsel %vm285, %v284, %v282
      %s288 = scalar_lea.vmem %s3, 6
      %v289 = vld [vmem:[%s288] sm:$0x3]
      %v291 = vlaneseq
      %v292 = vshrl.u32 %v291, 7
      %v293 = vsub.s32 0, %v292
      %v294 = vrot.slane %v289, %v293
      %v295 = vlaneseq
      %v296 = vshrl.u32 %v295, 7
      %v297 = vsub.s32 1, %v296
      %v298 = vrot.slane %v289, %v297
      %v301 = vmul.f32 %v287, %v294
      %v302 = vmul.f32 %v286, %v298
      %v305 = vrot.slane %v301, 4
      %v306 = vrot.slane %v302, 4
      %309 = vst [vmem:[#allocation2 + $0x10] sm:$0xf0] %v305
      %310 = vst [vmem:[#allocation2 + $0x18] sm:$0xf0] %v306
      %s311 = scalar_lea.vmem %s3, 8
      %v312 = vld [vmem:[%s311] sm:$0x3]
      %v314 = vlaneseq
      %v315 = vshrl.u32 %v314, 7
      %v316 = vsub.s32 0, %v315
      %v317 = vrot.slane %v312, %v316
      %v318 = vlaneseq
      %v319 = vshrl.u32 %v318, 7
      %v320 = vsub.s32 1, %v319
      %v321 = vrot.slane %v312, %v320
      %v322 = vcombine.low %v317, %v321
      %v324 = vmul.f32 %v198, %v322
      %v326 = vcombine.high %v324, %v324
      %328 = vst [vmem:[#allocation2 + $0x20] sm:$0xf] %v324
      %329 = vst [vmem:[#allocation2 + $0x28] sm:$0xf] %v326
      %330 = vrot.lane.b32.xlu0 %v198, 127
      %v331 = vpop.permute.xlu0 %330
      %332 = vrot.lane.b32.xlu0 %v200, 127
      %v333 = vpop.permute.xlu0 %332
      %vm334 = vcmp.lt.s32.totalorder %v207, 127
      %v335 = vsel %vm334, %v331, %v333
      %v336 = vsel %vm334, %v333, %v331
      %s337 = scalar_lea.vmem %s3, 10
      %v338 = vld [vmem:[%s337] sm:$0x3]
      %v340 = vlaneseq
      %v341 = vshrl.u32 %v340, 7
      %v342 = vsub.s32 0, %v341
      %v343 = vrot.slane %v338, %v342
      %v344 = vlaneseq
      %v345 = vshrl.u32 %v344, 7
      %v346 = vsub.s32 1, %v345
      %v347 = vrot.slane %v338, %v346
      %v350 = vmul.f32 %v335, %v343
      %v351 = vmul.f32 %v336, %v347
      %v354 = vrot.slane %v350, 4
      %v355 = vrot.slane %v351, 4
      %358 = vst [vmem:[#allocation2 + $0x20] sm:$0xf0] %v354
      %359 = vst [vmem:[#allocation2 + $0x28] sm:$0xf0] %v355
      %360 = vrot.lane.b32.xlu0 %v198, 113
      %v361 = vpop.permute.xlu0 %360
      %362 = vrot.lane.b32.xlu0 %v200, 113
      %v363 = vpop.permute.xlu0 %362
      %vm364 = vcmp.lt.s32.totalorder %v207, 113
      %v365 = vsel %vm364, %v361, %v363
      %v366 = vsel %vm364, %v363, %v361
      %s367 = scalar_lea.vmem %s3, 12
      %v368 = vld [vmem:[%s367] sm:$0x3]
      %v370 = vlaneseq
      %v371 = vshrl.u32 %v370, 7
      %v372 = vsub.s32 0, %v371
      %v373 = vrot.slane %v368, %v372
      %v374 = vlaneseq
      %v375 = vshrl.u32 %v374, 7
      %v376 = vsub.s32 1, %v375
      %v377 = vrot.slane %v368, %v376
      %v380 = vmul.f32 %v365, %v373
      %v381 = vmul.f32 %v366, %v377
      %382 = vst [vmem:[#allocation2 + $0x30] sm:$0xf] %v380
      %383 = vst [vmem:[#allocation2 + $0x38] sm:$0xf] %v381
      %384 = vrot.lane.b32.xlu0 %v198, 112
      %v385 = vpop.permute.xlu0 %384
      %386 = vrot.lane.b32.xlu0 %v200, 112
      %v387 = vpop.permute.xlu0 %386
      %vm388 = vcmp.lt.s32.totalorder %v207, 112
      %v389 = vsel %vm388, %v385, %v387
      %v390 = vsel %vm388, %v387, %v385
      %s391 = scalar_lea.vmem %s3, 14
      %v392 = vld [vmem:[%s391] sm:$0x3]
      %v394 = vlaneseq
      %v395 = vshrl.u32 %v394, 7
      %v396 = vsub.s32 0, %v395
      %v397 = vrot.slane %v392, %v396
      %v398 = vlaneseq
      %v399 = vshrl.u32 %v398, 7
      %v400 = vsub.s32 1, %v399
      %v401 = vrot.slane %v392, %v400
      %v404 = vmul.f32 %v389, %v397
      %v405 = vmul.f32 %v390, %v401
      %v408 = vrot.slane %v404, 4
      %v409 = vrot.slane %v405, 4
      %412 = vst [vmem:[#allocation2 + $0x30] sm:$0xf0] %v408
      %413 = vst [vmem:[#allocation2 + $0x38] sm:$0xf0] %v409
      %414 = vrot.lane.b32.xlu0 %v198, 111
      %v415 = vpop.permute.xlu0 %414
      %416 = vrot.lane.b32.xlu0 %v200, 111
      %v417 = vpop.permute.xlu0 %416
      %vm418 = vcmp.lt.s32.totalorder %v207, 111
      %v419 = vsel %vm418, %v415, %v417
      %v420 = vsel %vm418, %v417, %v415
      %s421 = scalar_lea.vmem %s3, 16
      %v422 = vld [vmem:[%s421] sm:$0x3]
      %v424 = vlaneseq
      %v425 = vshrl.u32 %v424, 7
      %v426 = vsub.s32 0, %v425
      %v427 = vrot.slane %v422, %v426
      %v428 = vlaneseq
      %v429 = vshrl.u32 %v428, 7
      %v430 = vsub.s32 1, %v429
      %v431 = vrot.slane %v422, %v430
      %v434 = vmul.f32 %v419, %v427
      %v435 = vmul.f32 %v420, %v431
      %436 = vst [vmem:[#allocation2 + $0x40] sm:$0xf] %v434
      %437 = vst [vmem:[#allocation2 + $0x48] sm:$0xf] %v435
      %v438 = vld [vmem:[%s1] sm:$0xff]
      %v439 = vld [vmem:[%s1 + $0x8] sm:$0xff]
      %v440 = vld [vmem:[#allocation2] sm:$0xff]
      %v441 = vld [vmem:[#allocation2 + $0x8] sm:$0xff]
      %v442 = vld [vmem:[#allocation2 + $0x10] sm:$0xff]
      %v443 = vld [vmem:[#allocation2 + $0x18] sm:$0xff]
      %v444 = vld [vmem:[#allocation2 + $0x20] sm:$0xff]
      %v445 = vld [vmem:[#allocation2 + $0x28] sm:$0xff]
      %v446 = vld [vmem:[#allocation2 + $0x30] sm:$0xff]
      %v447 = vld [vmem:[#allocation2 + $0x38] sm:$0xff]
      %v448 = vld [vmem:[#allocation2 + $0x40] sm:$0xf]
      %v449 = vld [vmem:[#allocation2 + $0x48] sm:$0xf]
      %v450 = vld [vmem:[%s2] sm:$0xff]
      %v451 = vld [vmem:[%s2 + $0x8] sm:$0xff]
      %453 = vset.pattern.permute.xlu0 0
      %454 = vperm.xlu0 %453, %v450
      %v455 = vpop.permute.xlu0 %454
      %458 = vset.pattern.permute.xlu0 0
      %459 = vperm.xlu0 %458, %v451
      %v460 = vpop.permute.xlu0 %459
      %vm462 = vcmask 293888
      %v464 = vsel %vm462, %v438, 0
      %v467 = vsel %vm462, %v439, 0
      %vm469 = vcmask 1043456
      %v471 = vsel %vm469, %v448, 0
      %v474 = vsel %vm469, %v449, 0
      %476 = vmatprep.subr.mxu0 %v441
      %477 = vmatpush1.msra.mxu0 %v440
      %478 = vmatprep.subr.mxu0 %v443
      %479 = vmatpush1.msra.mxu0 %v442
      %480 = vmatprep.subr.mxu0 %v445
      %481 = vmatpush1.msra.mxu0 %v444
      %482 = vmatprep.subr.mxu0 %v447
      %483 = vmatpush1.msra.mxu0 %v446
      %484 = vmatprep.subr.mxu0 %v474
      %485 = vmatpush1.msra.mxu0 %v471
      %486 = vmatprep.subr.mxu0 0.0
      %487 = vmatpush1.msra.mxu0 0.0
      %488 = vmatprep.subr.mxu0 0.0
      %489 = vmatpush1.msra.mxu0 0.0
      %490 = vmatprep.subr.mxu0 0.0
      %491 = vmatpush1.msra.mxu0 0.0
      %492 = vmatprep.subr.mxu0 0.0
      %493 = vmatpush1.msra.mxu0 0.0
      %494 = vmatprep.subr.mxu0 0.0
      %495 = vmatpush1.msra.mxu0 0.0
      %496 = vmatprep.subr.mxu0 0.0
      %497 = vmatpush1.msra.mxu0 0.0
      %498 = vmatprep.subr.mxu0 0.0
      %499 = vmatpush1.msra.mxu0 0.0
      %500 = vmatprep.subr.mxu0 0.0
      %501 = vmatpush1.msra.mxu0 0.0
      %502 = vmatprep.subr.mxu0 0.0
      %503 = vmatpush1.msra.mxu0 0.0
      %504 = vmatprep.subr.mxu0 0.0
      %505 = vmatpush1.msra.mxu0 0.0
      %506 = vmatprep.subr.mxu0 0.0
      %507 = vmatpush1.msra.mxu0 0.0
      %508 = vmatprep.subr.mxu0 0.0
      %509 = vmatpush1.msra.mxu0 0.0
      %510 = vmatprep.subr.mxu0 0.0
      %511 = vmatpush1.msra.mxu0 0.0
      %512 = vmatprep.subr.mxu0 0.0
      %513 = vmatpush1.msra.mxu0 0.0
      %514 = vmatprep.subr.mxu0 0.0
      %515 = vmatpush1.msra.mxu0 0.0
      %516 = vmatprep.subr.mxu0 0.0
      %517 = vmatpush1.msra.mxu0 0.0
      %518 = vmatprep.subr.mxu0 0.0
      %519 = vmatpush1.msra.mxu0 0.0
      %520 = vmatprep.subr.mxu0 0.0
      %521 = vmatpush1.msra.mxu0 0.0
      %522 = vmatprep.subr.mxu0 0.0
      %523 = vmatpush1.msra.mxu0 0.0
      %524 = vmatprep.subr.mxu0 0.0
      %525 = vmatpush1.msra.mxu0 0.0
      %526 = vmatprep.subr.mxu0 0.0
      %527 = vmatpush1.msra.mxu0 0.0
      %528 = vmatprep.subr.mxu0 0.0
      %529 = vmatpush1.msra.mxu0 0.0
      %530 = vmatprep.subr.mxu0 0.0
      %531 = vmatpush1.msra.mxu0 0.0
      %532 = vmatprep.subr.mxu0 0.0
      %533 = vmatpush1.msra.mxu0 0.0
      %534 = vmatprep.subr.mxu0 0.0
      %535 = vmatpush1.msra.mxu0 0.0
      %536 = vmatprep.subr.mxu0 0.0
      %537 = vmatpush1.msra.mxu0 0.0
      %538 = vmatprep.subr.mxu0 0.0
      %539 = vmatpush1.msra.mxu0 0.0
      %540 = vmatprep.mubr.f32.mxu0 0.0
      %541 = vmatmul.mubr.f32.gmra.mrb[0].mxu0 %v464
      %v542 = vpop.f32.mrb[0].mxu0
      %v543 = vadd.f32 %v455, %v542
      %v544 = vpop.f32.mrb[0].mxu0
      %v545 = vadd.f32 %v455, %v544
      %546 = vmatprep.mubr.f32.mxu0 0.0
      %547 = vmatmul.mubr.f32.gmra.mrb[0].mxu0 %v467
      %v548 = vpop.f32.mrb[0].mxu0
      %v549 = vadd.f32 %v460, %v548
      %v550 = vpop.f32.mrb[0].mxu0
      %v551 = vadd.f32 %v460, %v550
      %552 = vdwg.mxu0
      %553 = vst [vmem:[%s197] sm:$0xff] %v543
      %554 = vst [vmem:[%s197 + $0x8] sm:$0xff] %v545
      %555 = vst [vmem:[%s197 + $0x10] sm:$0xff] %v549
      %556 = vst [vmem:[%s197 + $0x18] sm:$0xff] %v551
      %p557 = scmp.lt.s32.totalorder %s15, 1
      %s558 = scalar_select %p557, %s15, 1
      %s559 = smul.addr %s558, 4
      %s560 = smul.addr %s559, 8
      %s561 = scalar_lea.vmem %s4, %s560
      // Predicated region
      $region37: #{soconv_forward.1} parent=35 // pred_check
        %p562 = pneg %p122
      $region38: #{soconv_forward.1} parent=35 // pred_check_branch
        %564 = sbr.rel (%p562) target = $region40
      $region39: #{soconv_forward.1} parent=35 // pred_region
        _
      $region40: #{soconv_forward.1} parent=35 // pred_fallthru
        _
    $region36: #{soconv_forward.1} parent=5 // pred_fallthru
      _
    %p565 = scmp.le.s32.totalorder 2, %s10
    // Predicated region
    $region41: #{soconv_forward.1} parent=5 // pred_check
      %p566 = pneg %p565
    $region42: #{soconv_forward.1} parent=5 // pred_check_branch
      %568 = sbr.rel (%p566) target = $region44
    $region43: #{soconv_forward.1} parent=5 // pred_region
      %s569 = ssub.s32 %s10, 2
      // Predicated region
      $region45: #{soconv_forward.1} parent=43 // pred_check
        %p570 = pneg %p128
      $region46: #{soconv_forward.1} parent=43 // pred_check_branch
        %572 = sbr.rel (%p570) target = $region48
      $region47: #{soconv_forward.1} parent=43 // pred_region
        %p573 = scmp.lt.s32.totalorder %s16, 1
        %s574 = scalar_select %p573, %s16, 1
        %s575 = smul.addr %s574, 4
        %s576 = smul.addr %s575, 8
        %s577 = scalar_lea.vmem %s4, %s576
      $region48: #{soconv_forward.1} parent=43 // pred_fallthru
        _
    $region44: #{soconv_forward.1} parent=5 // pred_fallthru
      _
  $region6: #{soconv_forward.1} parent=0 // loop_footer
    %s14 = sadd.s32 1, %s10
  $region7: #{soconv_forward.1} parent=0 // loop_footer_branch
    %9 = sbr.rel target = $region3
  $region8: #{soconv_forward.1} parent=0 // loop_exit
    _

</llo_original>
